<compile_context>
chip_gen: v7x
topology: tpu7x:2x2x1
jax: 0.10.0
libtpu: 0.0.40
codegen_flags: <defaults>
</compile_context>

<pallas_src>
import math

import jax
import jax.numpy as jnp
from jax.experimental import pallas as pl
from jax.experimental.pallas import tpu as pltpu

LANE = 128
SUBLANE = 8
N_GRID = 2  # split rows across 2 grid steps (balances v7x's 2 TensorCores)


def _round_up(x, m):
    return (x + m - 1) // m * m


def _fused_conv_kernel(x_ref, w_ref, b_ref, o_ref):
    # x_ref: (TM, Kp)  w_ref: (Kp, Np)  b_ref: (1, Np)  o_ref: (TM, Np)
    acc = jnp.dot(x_ref[...], w_ref[...], preferred_element_type=jnp.float32)
    o_ref[...] = jnp.maximum(acc + b_ref[...], 0.0).astype(o_ref.dtype)


def fused_matmul_bias_relu(patches, w_pad, b_pad, n_valid_cols):
    """relu(patches @ W + b) with pre-padded weight/bias, one pallas_call.

    patches: (M, K) f32; w_pad: (Kp, Np) f32; b_pad: (1, Np) f32.
    Returns (M, n_valid_cols) f32.
    """
    M, K = patches.shape
    Kp, Np = w_pad.shape

    tm = _round_up(-(-M // N_GRID), SUBLANE)   # rows per grid step, /8 aligned
    Mp = tm * N_GRID
    xpad = jnp.pad(patches, ((0, Mp - M), (0, Kp - K)))

    out = pl.pallas_call(
        _fused_conv_kernel,
        out_shape=jax.ShapeDtypeStruct((Mp, Np), jnp.float32),
        grid_spec=pltpu.PrefetchScalarGridSpec(
            num_scalar_prefetch=0,
            grid=(N_GRID,),
            in_specs=[
                pl.BlockSpec((tm, Kp), lambda i: (i, 0)),
                pl.BlockSpec((Kp, Np), lambda i: (0, 0)),
                pl.BlockSpec((1, Np), lambda i: (0, 0)),
            ],
            out_specs=pl.BlockSpec((tm, Np), lambda i: (i, 0)),
        ),
        compiler_params=pltpu.CompilerParams(
            dimension_semantics=("parallel",)),
    )(xpad, w_pad, b_pad)
    # Padded rows hold relu(bias) garbage and padded lanes are relu(0); slice both off.
    return out[:M, :n_valid_cols]


def im2col_nhwc(x, kh, kw, stride, pad):
    """x: (N, H, W, C) -> (N*OH*OW, kh*kw*C) patches, feature order (kh, kw, c)."""
    n, h, w, c = x.shape
    oh = (h + 2 * pad - kh) // stride + 1
    ow = (w + 2 * pad - kw) // stride + 1
    xp = jnp.pad(x, ((0, 0), (pad, pad), (pad, pad), (0, 0)))
    cols = [xp[:, i:i + stride * oh:stride, j:j + stride * ow:stride, :]
            for i in range(kh) for j in range(kw)]
    patches = jnp.concatenate(cols, axis=-1)          # (N, OH, OW, kh*kw*C)
    return patches.reshape(n * oh * ow, kh * kw * c), oh, ow


def _weight_to_mat(w):
    """(OC, C, KH, KW) -> (KH*KW*C, OC), matching the im2col (kh, kw, c) order."""
    oc, c, kh, kw = w.shape
    return jnp.transpose(w, (2, 3, 1, 0)).reshape(kh * kw * c, oc)


class Model:
    """JAX/Pallas port of the PyTorch module (PyTorch-style deterministic init)."""

    KSIZE = 10
    STRIDE = 2
    PAD = 1

    def __init__(self, key):
        k = jax.random.split(key, 6)

        def conv_params(kw_key, kb_key, oc, ic, ksize):
            fan_in = ic * ksize * ksize
            bound = 1.0 / math.sqrt(fan_in)  # PyTorch Conv2d default init bound
            w = jax.random.uniform(kw_key, (oc, ic, ksize, ksize), jnp.float32, -bound, bound)
            b = jax.random.uniform(kb_key, (oc,), jnp.float32, -bound, bound)
            return w, b

        self.w1, self.b1 = conv_params(k[0], k[1], 10, 1, self.KSIZE)
        self.w2, self.b2 = conv_params(k[2], k[3], 10, 10, self.KSIZE)
        self.w3, self.b3 = conv_params(k[4], k[5], 10, 10, self.KSIZE)

        # --- precomputed (hoisted) fused + padded weight/bias ---
        # conv1 (1 input channel) embedded into channel 0 of a 10-channel weight;
        # exact because the input fed to the fused matmul is a channel-tile of x.
        w1_exp = jnp.zeros((10, 10, self.KSIZE, self.KSIZE), jnp.float32)
        w1_exp = w1_exp.at[:, 0, :, :].set(self.w1[:, 0, :, :])
        wf = jnp.concatenate(
            [_weight_to_mat(w1_exp), _weight_to_mat(self.w2), _weight_to_mat(self.w3)],
            axis=1)                                              # (1000, 30)
        bf = jnp.concatenate([self.b1, self.b2, self.b3])        # (30,)

        K, self.n_out = wf.shape
        Kp = _round_up(K, LANE)
        Np = _round_up(self.n_out, LANE)
        self.wf_pad = jnp.pad(wf, ((0, Kp - K), (0, Np - self.n_out)))    # (1024, 128)
        self.bf_pad = jnp.pad(bf, (0, Np - self.n_out)).reshape(1, Np)    # (1, 128)

    def __call__(self, x):
        # TODO(synk): the original PyTorch forward feeds the same 1-channel input to
        # conv2/conv3 (which expect 10 input channels) and is shape-inconsistent; here
        # the input is channel-tiled to 10 channels so all three branches see the same
        # pixel data and run (this also makes the conv1 fusion exact by construction).
        n, c, h, w = x.shape
        assert c == 1
        oc = 10
        x_nhwc = jnp.transpose(x, (0, 2, 3, 1))              # (N, H, W, 1)
        x10 = jnp.broadcast_to(x_nhwc, (n, h, w, oc))        # channel tile
        patches, oh, ow = im2col_nhwc(x10, self.KSIZE, self.KSIZE, self.STRIDE, self.PAD)
        out = fused_matmul_bias_relu(patches, self.wf_pad, self.bf_pad, self.n_out)
        out = out.reshape(n, oh, ow, self.n_out)             # (N, OH, OW, 30) NHWC
        out1 = jnp.transpose(out[..., 0:oc], (0, 3, 1, 2))   # back to NCHW like PyTorch
        out2 = jnp.transpose(out[..., oc:2 * oc], (0, 3, 1, 2))
        out3 = jnp.transpose(out[..., 2 * oc:3 * oc], (0, 3, 1, 2))
        return [out1, out2, out3]


def _ref_conv_relu(x, w, b, stride, pad):
    y = jax.lax.conv_general_dilated(
        x, w, window_strides=(stride, stride), padding=[(pad, pad), (pad, pad)],
        dimension_numbers=("NCHW", "OIHW", "NCHW"))
    return jnp.maximum(y + b[None, :, None, None], 0.0)


if __name__ == "__main__":
    key = jax.random.PRNGKey(0)
    k_model, k_x = jax.random.split(key)

    model = Model(k_model)

    # small NCHW input: batch=2, 1 channel, 32x32 spatial -> conv outputs (2, 10, 13, 13)
    x = jax.random.normal(k_x, (2, 1, 32, 32), jnp.float32)

    fwd = jax.jit(lambda inp: model(inp))
    outs = jax.block_until_ready(fwd(x))

    # sanity-check against plain-JAX reference convs
    x10_nchw = jnp.tile(x, (1, 10, 1, 1))
    refs = [
        _ref_conv_relu(x, model.w1, model.b1, 2, 1),
        _ref_conv_relu(x10_nchw, model.w2, model.b2, 2, 1),
        _ref_conv_relu(x10_nchw, model.w3, model.b3, 2, 1),
    ]
    for o, r in zip(outs, refs):
        assert o.shape == r.shape, (o.shape, r.shape)
        assert jnp.allclose(o, r, atol=1e-4, rtol=1e-4)

    print("KERNEL_OK")
</pallas_src>

<mosaic_0001>
module attributes {stable_mosaic.version = 11 : i64} {
  func.func @_fused_conv_kernel(%arg0: i32, %arg1: memref<176x1024xf32, #tpu.memory_space<vmem>>, %arg2: memref<1024x128xf32, #tpu.memory_space<vmem>>, %arg3: memref<1x128xf32, #tpu.memory_space<vmem>>, %arg4: memref<176x128xf32, #tpu.memory_space<vmem>>) attributes {dimension_semantics = [#tpu.dimension_semantics<parallel>], iteration_bounds = array<i64: 2>, scalar_prefetch = 0 : i64, scratch_operands = 0 : i64, tpu.core_type = #tpu.core_type<tc>, window_params = [{transform_indices = @transform_0, window_bounds = array<i64: 176, 1024>}, {pipeline_mode = #tpu.pipeline_mode<synchronous>, transform_indices = @transform_1, window_bounds = array<i64: 1024, 128>}, {pipeline_mode = #tpu.pipeline_mode<synchronous>, transform_indices = @transform_2, window_bounds = array<i64: 1, 128>}, {transform_indices = @transform_3, window_bounds = array<i64: 176, 128>}]} {
    %c0 = arith.constant 0 : index
    %c0_0 = arith.constant 0 : index
    %0 = vector.load %arg1[%c0, %c0_0] : memref<176x1024xf32, #tpu.memory_space<vmem>>, vector<176x1024xf32>
    %c0_1 = arith.constant 0 : index
    %c0_2 = arith.constant 0 : index
    %1 = vector.load %arg2[%c0_1, %c0_2] : memref<1024x128xf32, #tpu.memory_space<vmem>>, vector<1024x128xf32>
    %cst = arith.constant dense<0.000000e+00> : vector<176x128xf32>
    %2 = tpu.matmul %0, %1, %cst {dimension_numbers = #tpu.dot_dimension_numbers<[1], [0], [0], [1], [0, 0, 1, 1], [], []>} : vector<176x1024xf32>, vector<1024x128xf32>, vector<176x128xf32> -> vector<176x128xf32>
    %c0_3 = arith.constant 0 : index
    %c0_4 = arith.constant 0 : index
    %3 = vector.load %arg3[%c0_3, %c0_4] : memref<1x128xf32, #tpu.memory_space<vmem>>, vector<1x128xf32>
    %4 = vector.broadcast %3 : vector<1x128xf32> to vector<176x128xf32>
    %5 = arith.addf %2, %4 : vector<176x128xf32>
    %cst_5 = arith.constant 0.000000e+00 : f32
    %6 = vector.broadcast %cst_5 : f32 to vector<176x128xf32>
    %7 = arith.maximumf %5, %6 : vector<176x128xf32>
    %c0_6 = arith.constant 0 : index
    %c0_7 = arith.constant 0 : index
    %8 = vector.load %arg4[%c0_6, %c0_7] : memref<176x128xf32, #tpu.memory_space<vmem>>, vector<176x128xf32>
    tpu.vector_store %arg4[%c0_6, %c0_7], %7 {strides = array<i32>} : memref<176x128xf32, #tpu.memory_space<vmem>>, vector<176x128xf32>,
    return
  }
  func.func @transform_0(%arg0: i32) -> (i32, i32) {
    %c0_i32 = arith.constant 0 : i32
    %c0_i32_0 = arith.constant 0 : i32
    return %arg0, %c0_i32 : i32, i32
  }
  func.func @transform_1(%arg0: i32) -> (i32, i32) {
    %c0_i32 = arith.constant 0 : i32
    %c0_i32_0 = arith.constant 0 : i32
    %c0_i32_1 = arith.constant 0 : i32
    return %c0_i32, %c0_i32_0 : i32, i32
  }
  func.func @transform_2(%arg0: i32) -> (i32, i32) {
    %c0_i32 = arith.constant 0 : i32
    %c0_i32_0 = arith.constant 0 : i32
    %c0_i32_1 = arith.constant 0 : i32
    return %c0_i32, %c0_i32_0 : i32, i32
  }
  func.func @transform_3(%arg0: i32) -> (i32, i32) {
    %c0_i32 = arith.constant 0 : i32
    %c0_i32_0 = arith.constant 0 : i32
    return %arg0, %c0_i32 : i32, i32
  }
}

</mosaic_0001>

<llo_original>
// kernel: _lambda_.1
$region0: #{_lambda_.1}
  #allocation0 [shape = 'u32[]', space=smem, size = 0x4, offset = 0x4, fixed_abs, tag = 'smem constant byte address 0x4 - core index']
  #allocation1 [shape = 'u32[144,128]{1,0:T(1,128)}', space=vmem, size = 0x12000, scoped, tag = 'internal scratch']
  %s0 = inlined_call_operand.vmem [shape: f32[352,1024], index: 0, kind: input, shape index: {}]
  %s1 = inlined_call_operand.vmem [shape: f32[1024,128], index: 1, kind: input, shape index: {}]
  %s2 = inlined_call_operand.vmem [shape: f32[1,128], index: 2, kind: input, shape index: {}]
  %s3 = inlined_call_operand.vmem [shape: f32[352,128], index: 3, kind: output, shape index: {}]
  %s4 = sld [smem:[#allocation0]]
  $region45: #{_lambda_.1} parent=0
    _
  %s6 = ssub.s32 1, %s4
  %s7 = scalar_select 0, %s6, %s4
  loop: start=0, step=1, limit=4
  $region2: #{_lambda_.1} parent=0 // loop_pre_header
    _
  $region3: #{_lambda_.1} parent=0 // loop_header
    %s9 = sphi 0, %s13
    %p10 = scmp.ge.s32.totalorder %s9, 4
    %s19 = sphi 0, %s21
    %s22 = sphi 0, %s19
    %s23 = sphi 0, %s22
    %s39 = sphi 0, %s23
    %s43 = sphi 0, %s43
    %s45 = sphi 0, %s43
    %s46 = sphi 0, %s45
    %s60 = sphi 0, %s46
    %s64 = sphi 0, %s64
    %s66 = sphi 0, %s64
    %s67 = sphi 0, %s66
    %s81 = sphi 0, %s67
    %s87 = sphi 0, %s89
    %s90 = sphi 0, %s87
    %s91 = sphi 0, %s90
    %s107 = sphi 0, %s91
  $region4: #{_lambda_.1} parent=0 // loop_header_branch
    %12 = sbr.rel (%p10) target = $region8
  $region5: #{_lambda_.1} parent=0 // loop_body
    %s14 = ssub.s32 %s9, 1
    %s15 = ssub.s32 %s9, 2
    %s16 = sadd.s32 %s9, 1
    %s17 = ssub.s32 %s9, %s16
    %p18 = scmp.eq.s32.totalorder %s17, 0
    %s20 = sadd.s32 %s19, 1
    %s21 = scalar_select %p18, %s19, %s20
    %p24 = pneg %p18
    %p25 = scmp.eq.s32.totalorder %s9, 1
    %p26 = por %p24, %p25
    %p27 = scmp.ne.s32.totalorder %s19, %s22
    %p28 = scmp.eq.s32.totalorder %s9, 0
    %p29 = por %p27, %p28
    %p30 = scmp.ne.s32.totalorder %s19, %s22
    %p31 = scmp.eq.s32.totalorder %s14, 1
    %p32 = por %p30, %p31
    %p33 = scmp.ne.s32.totalorder %s22, %s23
    %p34 = scmp.eq.s32.totalorder %s14, 0
    %p35 = por %p33, %p34
    %p36 = scmp.ne.s32.totalorder %s22, %s23
    %p37 = scmp.eq.s32.totalorder %s15, 1
    %p38 = por %p36, %p37
    %p40 = scmp.ne.s32.totalorder %s23, %s39
    %p41 = scmp.eq.s32.totalorder %s15, 0
    %p42 = por %p40, %p41
    %s44 = sadd.s32 %s43, 1
    %p47 = scmp.eq.s32.totalorder %s9, 1
    %p48 = scmp.ne.s32.totalorder %s43, %s45
    %p49 = scmp.eq.s32.totalorder %s9, 0
    %p50 = por %p48, %p49
    %p51 = scmp.ne.s32.totalorder %s43, %s45
    %p52 = scmp.eq.s32.totalorder %s14, 1
    %p53 = por %p51, %p52
    %p54 = scmp.ne.s32.totalorder %s45, %s46
    %p55 = scmp.eq.s32.totalorder %s14, 0
    %p56 = por %p54, %p55
    %p57 = scmp.ne.s32.totalorder %s45, %s46
    %p58 = scmp.eq.s32.totalorder %s15, 1
    %p59 = por %p57, %p58
    %p61 = scmp.ne.s32.totalorder %s46, %s60
    %p62 = scmp.eq.s32.totalorder %s15, 0
    %p63 = por %p61, %p62
    %s65 = sadd.s32 %s64, 1
    %p68 = scmp.eq.s32.totalorder %s9, 1
    %p69 = scmp.ne.s32.totalorder %s64, %s66
    %p70 = scmp.eq.s32.totalorder %s9, 0
    %p71 = por %p69, %p70
    %p72 = scmp.ne.s32.totalorder %s64, %s66
    %p73 = scmp.eq.s32.totalorder %s14, 1
    %p74 = por %p72, %p73
    %p75 = scmp.ne.s32.totalorder %s66, %s67
    %p76 = scmp.eq.s32.totalorder %s14, 0
    %p77 = por %p75, %p76
    %p78 = scmp.ne.s32.totalorder %s66, %s67
    %p79 = scmp.eq.s32.totalorder %s15, 1
    %p80 = por %p78, %p79
    %p82 = scmp.ne.s32.totalorder %s67, %s81
    %p83 = scmp.eq.s32.totalorder %s15, 0
    %p84 = por %p82, %p83
    %s85 = ssub.s32 %s9, %s16
    %p86 = scmp.eq.s32.totalorder %s85, 0
    %s88 = sadd.s32 %s87, 1
    %s89 = scalar_select %p86, %s87, %s88
    %p92 = pneg %p86
    %p93 = scmp.eq.s32.totalorder %s9, 1
    %p94 = por %p92, %p93
    %p95 = scmp.ne.s32.totalorder %s87, %s90
    %p96 = scmp.eq.s32.totalorder %s9, 0
    %p97 = por %p95, %p96
    %p98 = scmp.ne.s32.totalorder %s87, %s90
    %p99 = scmp.eq.s32.totalorder %s14, 1
    %p100 = por %p98, %p99
    %p101 = scmp.ne.s32.totalorder %s90, %s91
    %p102 = scmp.eq.s32.totalorder %s14, 0
    %p103 = por %p101, %p102
    %p104 = scmp.ne.s32.totalorder %s90, %s91
    %p105 = scmp.eq.s32.totalorder %s15, 1
    %p106 = por %p104, %p105
    %p108 = scmp.ne.s32.totalorder %s91, %s107
    %p109 = scmp.eq.s32.totalorder %s15, 0
    %p110 = por %p108, %p109
    %p111 = scmp.le.s32.totalorder 1, %s9
    %p112 = scmp.lt.s32.totalorder %s9, 3
    %p113 = pnand %p111, %p112
    %p114 = pneg %p113
    // Predicated region
    $region9: #{_lambda_.1} parent=5 // pred_check
      _
    $region10: #{_lambda_.1} parent=5 // pred_check_branch
      %116 = sbr.rel (%p113) target = $region12
    $region11: #{_lambda_.1} parent=5 // pred_region
      %s117 = ssub.s32 %s9, 1
      // Predicated region
      $region13: #{_lambda_.1} parent=11 // pred_check
        %p118 = pneg %p56
      $region14: #{_lambda_.1} parent=11 // pred_check_branch
        %120 = sbr.rel (%p118) target = $region16
      $region15: #{_lambda_.1} parent=11 // pred_region
        _
      $region16: #{_lambda_.1} parent=11 // pred_fallthru
        _
      // Predicated region
      $region17: #{_lambda_.1} parent=11 // pred_check
        %p121 = pneg %p77
      $region18: #{_lambda_.1} parent=11 // pred_check_branch
        %123 = sbr.rel (%p121) target = $region20
      $region19: #{_lambda_.1} parent=11 // pred_region
        _
      $region20: #{_lambda_.1} parent=11 // pred_fallthru
        _
    $region12: #{_lambda_.1} parent=5 // pred_fallthru
      _
    %p124 = scmp.lt.s32.totalorder %s9, 2
    // Predicated region
    $region21: #{_lambda_.1} parent=5 // pred_check
      %p125 = pneg %p124
    $region22: #{_lambda_.1} parent=5 // pred_check_branch
      %127 = sbr.rel (%p125) target = $region24
    $region23: #{_lambda_.1} parent=5 // pred_region
      // Predicated region
      $region25: #{_lambda_.1} parent=23 // pred_check
        %p128 = pneg %p29
      $region26: #{_lambda_.1} parent=23 // pred_check_branch
        %130 = sbr.rel (%p128) target = $region28
      $region27: #{_lambda_.1} parent=23 // pred_region
        %s131 = smul.u32 22, %s9
        %p132 = scmp.lt.s32.totalorder %s131, 43
        %s133 = scalar_select %p132, %s131, 43
        %s134 = smul.addr %s133, 8
        %s135 = smul.addr %s134, 8
        %s136 = scalar_lea.vmem %s0, %s135
        %s137 = smul.u32 22, %s9
      $region28: #{_lambda_.1} parent=23 // pred_fallthru
        _
    $region24: #{_lambda_.1} parent=5 // pred_fallthru
      _
    %p138 = scmp.le.s32.totalorder 1, %s9
    %p139 = scmp.lt.s32.totalorder %s9, 3
    %p140 = pnand %p138, %p139
    %p141 = pneg %p140
    // Predicated region
    $region29: #{_lambda_.1} parent=5 // pred_check
      _
    $region30: #{_lambda_.1} parent=5 // pred_check_branch
      %143 = sbr.rel (%p140) target = $region32
    $region31: #{_lambda_.1} parent=5 // pred_region
      %s144 = ssub.s32 %s9, 1
      %s145 = smul.u32 22, %s14
      %p146 = scmp.lt.s32.totalorder %s145, 43
      %s147 = scalar_select %p146, %s145, 43
      %s148 = smul.addr %s147, 8
      %s149 = smul.addr %s148, 8
      %s150 = scalar_lea.vmem %s0, %s149
      %p151 = pneg %p35
      %p152 = pneg %p32
      %p153 = pneg %p56
      %p154 = pneg %p53
      %p155 = pneg %p77
      %p156 = pneg %p74
      %p157 = pneg %p103
      %p158 = pneg %p100
      %s159 = smul.u32 22, %s14
      %p160 = scmp.lt.s32.totalorder %s159, 43
      %s161 = scalar_select %p160, %s159, 43
      %s162 = smul.addr %s161, 8
      %s163 = scalar_lea.vmem %s3, %s162
      %s164 = smul.u32 22, %s14
      %p165 = scmp.lt.s32.totalorder %s164, 43
      %s166 = scalar_select %p165, %s164, 43
      %s167 = smul.addr %s166, 8
      %s168 = smul.addr %s167, 8
      %s169 = scalar_lea.vmem %s0, %s168
      %s170 = smul.u32 22, %s14
      %s171 = smul.u32 22, %s14
      %p172 = scmp.lt.s32.totalorder %s171, 43
      %s173 = scalar_select %p172, %s171, 43
      %s174 = smul.addr %s173, 8
      %s175 = scalar_lea.vmem %s3, %s174
      %s176 = smul.u32 22, %s14
      %v177 = vld [vmem:[%s169] sm:$0xff]
      %v178 = vld [vmem:[%s169 + $0x8] sm:$0xff]
      %v179 = vld [vmem:[%s169 + $0x10] sm:$0xff]
      %v180 = vld [vmem:[%s169 + $0x18] sm:$0xff]
      %v181 = vld [vmem:[%s169 + $0x20] sm:$0xff]
      %v182 = vld [vmem:[%s169 + $0x28] sm:$0xff]
      %v183 = vld [vmem:[%s169 + $0x30] sm:$0xff]
      %v184 = vld [vmem:[%s169 + $0x38] sm:$0xff]
      %v185 = vld [vmem:[%s169 + $0x40] sm:$0xff]
      %v186 = vld [vmem:[%s169 + $0x48] sm:$0xff]
      %v187 = vld [vmem:[%s169 + $0x50] sm:$0xff]
      %v188 = vld [vmem:[%s169 + $0x58] sm:$0xff]
      %v189 = vld [vmem:[%s169 + $0x60] sm:$0xff]
      %v190 = vld [vmem:[%s169 + $0x68] sm:$0xff]
      %v191 = vld [vmem:[%s169 + $0x70] sm:$0xff]
      %v192 = vld [vmem:[%s169 + $0x78] sm:$0xff]
      %v193 = vld [vmem:[%s169 + $0x80] sm:$0xff]
      %v194 = vld [vmem:[%s169 + $0x88] sm:$0xff]
      %v195 = vld [vmem:[%s169 + $0x90] sm:$0xff]
      %v196 = vld [vmem:[%s169 + $0x98] sm:$0xff]
      %v197 = vld [vmem:[%s169 + $0xa0] sm:$0xff]
      %v198 = vld [vmem:[%s169 + $0xa8] sm:$0xff]
      %v199 = vld [vmem:[%s169 + $0xb0] sm:$0xff]
      %v200 = vld [vmem:[%s169 + $0xb8] sm:$0xff]
      %v201 = vld [vmem:[%s169 + $0xc0] sm:$0xff]
      %v202 = vld [vmem:[%s169 + $0xc8] sm:$0xff]
      %v203 = vld [vmem:[%s169 + $0xd0] sm:$0xff]
      %v204 = vld [vmem:[%s169 + $0xd8] sm:$0xff]
      %v205 = vld [vmem:[%s169 + $0xe0] sm:$0xff]
      %v206 = vld [vmem:[%s169 + $0xe8] sm:$0xff]
      %v207 = vld [vmem:[%s169 + $0xf0] sm:$0xff]
      %v208 = vld [vmem:[%s169 + $0xf8] sm:$0xff]
      %v209 = vld [vmem:[%s169 + $0x100] sm:$0xff]
      %v210 = vld [vmem:[%s169 + $0x108] sm:$0xff]
      %v211 = vld [vmem:[%s169 + $0x110] sm:$0xff]
      %v212 = vld [vmem:[%s169 + $0x118] sm:$0xff]
      %v213 = vld [vmem:[%s169 + $0x120] sm:$0xff]
      %v214 = vld [vmem:[%s169 + $0x128] sm:$0xff]
      %v215 = vld [vmem:[%s169 + $0x130] sm:$0xff]
      %v216 = vld [vmem:[%s169 + $0x138] sm:$0xff]
      %v217 = vld [vmem:[%s169 + $0x140] sm:$0xff]
      %v218 = vld [vmem:[%s169 + $0x148] sm:$0xff]
      %v219 = vld [vmem:[%s169 + $0x150] sm:$0xff]
      %v220 = vld [vmem:[%s169 + $0x158] sm:$0xff]
      %v221 = vld [vmem:[%s169 + $0x160] sm:$0xff]
      %v222 = vld [vmem:[%s169 + $0x168] sm:$0xff]
      %v223 = vld [vmem:[%s169 + $0x170] sm:$0xff]
      %v224 = vld [vmem:[%s169 + $0x178] sm:$0xff]
      %v225 = vld [vmem:[%s169 + $0x180] sm:$0xff]
      %v226 = vld [vmem:[%s169 + $0x188] sm:$0xff]
      %v227 = vld [vmem:[%s169 + $0x190] sm:$0xff]
      %v228 = vld [vmem:[%s169 + $0x198] sm:$0xff]
      %v229 = vld [vmem:[%s169 + $0x1a0] sm:$0xff]
      %v230 = vld [vmem:[%s169 + $0x1a8] sm:$0xff]
      %v231 = vld [vmem:[%s169 + $0x1b0] sm:$0xff]
      %v232 = vld [vmem:[%s169 + $0x1b8] sm:$0xff]
      %v233 = vld [vmem:[%s169 + $0x1c0] sm:$0xff]
      %v234 = vld [vmem:[%s169 + $0x1c8] sm:$0xff]
      %v235 = vld [vmem:[%s169 + $0x1d0] sm:$0xff]
      %v236 = vld [vmem:[%s169 + $0x1d8] sm:$0xff]
      %v237 = vld [vmem:[%s169 + $0x1e0] sm:$0xff]
      %v238 = vld [vmem:[%s169 + $0x1e8] sm:$0xff]
      %v239 = vld [vmem:[%s169 + $0x1f0] sm:$0xff]
      %v240 = vld [vmem:[%s169 + $0x1f8] sm:$0xff]
      %v241 = vld [vmem:[%s169 + $0x200] sm:$0xff]
      %v242 = vld [vmem:[%s169 + $0x208] sm:$0xff]
      %v243 = vld [vmem:[%s169 + $0x210] sm:$0xff]
      %v244 = vld [vmem:[%s169 + $0x218] sm:$0xff]
      %v245 = vld [vmem:[%s169 + $0x220] sm:$0xff]
      %v246 = vld [vmem:[%s169 + $0x228] sm:$0xff]
      %v247 = vld [vmem:[%s169 + $0x230] sm:$0xff]
      %v248 = vld [vmem:[%s169 + $0x238] sm:$0xff]
      %v249 = vld [vmem:[%s169 + $0x240] sm:$0xff]
      %v250 = vld [vmem:[%s169 + $0x248] sm:$0xff]
      %v251 = vld [vmem:[%s169 + $0x250] sm:$0xff]
      %v252 = vld [vmem:[%s169 + $0x258] sm:$0xff]
      %v253 = vld [vmem:[%s169 + $0x260] sm:$0xff]
      %v254 = vld [vmem:[%s169 + $0x268] sm:$0xff]
      %v255 = vld [vmem:[%s169 + $0x270] sm:$0xff]
      %v256 = vld [vmem:[%s169 + $0x278] sm:$0xff]
      %v257 = vld [vmem:[%s169 + $0x280] sm:$0xff]
      %v258 = vld [vmem:[%s169 + $0x288] sm:$0xff]
      %v259 = vld [vmem:[%s169 + $0x290] sm:$0xff]
      %v260 = vld [vmem:[%s169 + $0x298] sm:$0xff]
      %v261 = vld [vmem:[%s169 + $0x2a0] sm:$0xff]
      %v262 = vld [vmem:[%s169 + $0x2a8] sm:$0xff]
      %v263 = vld [vmem:[%s169 + $0x2b0] sm:$0xff]
      %v264 = vld [vmem:[%s169 + $0x2b8] sm:$0xff]
      %v265 = vld [vmem:[%s169 + $0x2c0] sm:$0xff]
      %v266 = vld [vmem:[%s169 + $0x2c8] sm:$0xff]
      %v267 = vld [vmem:[%s169 + $0x2d0] sm:$0xff]
      %v268 = vld [vmem:[%s169 + $0x2d8] sm:$0xff]
      %v269 = vld [vmem:[%s169 + $0x2e0] sm:$0xff]
      %v270 = vld [vmem:[%s169 + $0x2e8] sm:$0xff]
      %v271 = vld [vmem:[%s169 + $0x2f0] sm:$0xff]
      %v272 = vld [vmem:[%s169 + $0x2f8] sm:$0xff]
      %v273 = vld [vmem:[%s169 + $0x300] sm:$0xff]
      %v274 = vld [vmem:[%s169 + $0x308] sm:$0xff]
      %v275 = vld [vmem:[%s169 + $0x310] sm:$0xff]
      %v276 = vld [vmem:[%s169 + $0x318] sm:$0xff]
      %v277 = vld [vmem:[%s169 + $0x320] sm:$0xff]
      %v278 = vld [vmem:[%s169 + $0x328] sm:$0xff]
      %v279 = vld [vmem:[%s169 + $0x330] sm:$0xff]
      %v280 = vld [vmem:[%s169 + $0x338] sm:$0xff]
      %v281 = vld [vmem:[%s169 + $0x340] sm:$0xff]
      %v282 = vld [vmem:[%s169 + $0x348] sm:$0xff]
      %v283 = vld [vmem:[%s169 + $0x350] sm:$0xff]
      %v284 = vld [vmem:[%s169 + $0x358] sm:$0xff]
      %v285 = vld [vmem:[%s169 + $0x360] sm:$0xff]
      %v286 = vld [vmem:[%s169 + $0x368] sm:$0xff]
      %v287 = vld [vmem:[%s169 + $0x370] sm:$0xff]
      %v288 = vld [vmem:[%s169 + $0x378] sm:$0xff]
      %v289 = vld [vmem:[%s169 + $0x380] sm:$0xff]
      %v290 = vld [vmem:[%s169 + $0x388] sm:$0xff]
      %v291 = vld [vmem:[%s169 + $0x390] sm:$0xff]
      %v292 = vld [vmem:[%s169 + $0x398] sm:$0xff]
      %v293 = vld [vmem:[%s169 + $0x3a0] sm:$0xff]
      %v294 = vld [vmem:[%s169 + $0x3a8] sm:$0xff]
      %v295 = vld [vmem:[%s169 + $0x3b0] sm:$0xff]
      %v296 = vld [vmem:[%s169 + $0x3b8] sm:$0xff]
      %v297 = vld [vmem:[%s169 + $0x3c0] sm:$0xff]
      %v298 = vld [vmem:[%s169 + $0x3c8] sm:$0xff]
      %v299 = vld [vmem:[%s169 + $0x3d0] sm:$0xff]
      %v300 = vld [vmem:[%s169 + $0x3d8] sm:$0xff]
      %v301 = vld [vmem:[%s169 + $0x3e0] sm:$0xff]
      %v302 = vld [vmem:[%s169 + $0x3e8] sm:$0xff]
      %v303 = vld [vmem:[%s169 + $0x3f0] sm:$0xff]
      %v304 = vld [vmem:[%s169 + $0x3f8] sm:$0xff]
      %v305 = vld [vmem:[%s169 + $0x400] sm:$0xff]
      %v306 = vld [vmem:[%s169 + $0x408] sm:$0xff]
      %v307 = vld [vmem:[%s169 + $0x410] sm:$0xff]
      %v308 = vld [vmem:[%s169 + $0x418] sm:$0xff]
      %v309 = vld [vmem:[%s169 + $0x420] sm:$0xff]
      %v310 = vld [vmem:[%s169 + $0x428] sm:$0xff]
      %v311 = vld [vmem:[%s169 + $0x430] sm:$0xff]
      %v312 = vld [vmem:[%s169 + $0x438] sm:$0xff]
      %v313 = vld [vmem:[%s169 + $0x440] sm:$0xff]
      %v314 = vld [vmem:[%s169 + $0x448] sm:$0xff]
      %v315 = vld [vmem:[%s169 + $0x450] sm:$0xff]
      %v316 = vld [vmem:[%s169 + $0x458] sm:$0xff]
      %v317 = vld [vmem:[%s169 + $0x460] sm:$0xff]
      %v318 = vld [vmem:[%s169 + $0x468] sm:$0xff]
      %v319 = vld [vmem:[%s169 + $0x470] sm:$0xff]
      %v320 = vld [vmem:[%s169 + $0x478] sm:$0xff]
      %v321 = vld [vmem:[%s169 + $0x480] sm:$0xff]
      %v322 = vld [vmem:[%s169 + $0x488] sm:$0xff]
      %v323 = vld [vmem:[%s169 + $0x490] sm:$0xff]
      %v324 = vld [vmem:[%s169 + $0x498] sm:$0xff]
      %v325 = vld [vmem:[%s169 + $0x4a0] sm:$0xff]
      %v326 = vld [vmem:[%s169 + $0x4a8] sm:$0xff]
      %v327 = vld [vmem:[%s169 + $0x4b0] sm:$0xff]
      %v328 = vld [vmem:[%s169 + $0x4b8] sm:$0xff]
      %v329 = vld [vmem:[%s169 + $0x4c0] sm:$0xff]
      %v330 = vld [vmem:[%s169 + $0x4c8] sm:$0xff]
      %v331 = vld [vmem:[%s169 + $0x4d0] sm:$0xff]
      %v332 = vld [vmem:[%s169 + $0x4d8] sm:$0xff]
      %v333 = vld [vmem:[%s169 + $0x4e0] sm:$0xff]
      %v334 = vld [vmem:[%s169 + $0x4e8] sm:$0xff]
      %v335 = vld [vmem:[%s169 + $0x4f0] sm:$0xff]
      %v336 = vld [vmem:[%s169 + $0x4f8] sm:$0xff]
      %v337 = vld [vmem:[%s169 + $0x500] sm:$0xff]
      %v338 = vld [vmem:[%s169 + $0x508] sm:$0xff]
      %v339 = vld [vmem:[%s169 + $0x510] sm:$0xff]
      %v340 = vld [vmem:[%s169 + $0x518] sm:$0xff]
      %v341 = vld [vmem:[%s169 + $0x520] sm:$0xff]
      %v342 = vld [vmem:[%s169 + $0x528] sm:$0xff]
      %v343 = vld [vmem:[%s169 + $0x530] sm:$0xff]
      %v344 = vld [vmem:[%s169 + $0x538] sm:$0xff]
      %v345 = vld [vmem:[%s169 + $0x540] sm:$0xff]
      %v346 = vld [vmem:[%s169 + $0x548] sm:$0xff]
      %v347 = vld [vmem:[%s169 + $0x550] sm:$0xff]
      %v348 = vld [vmem:[%s169 + $0x558] sm:$0xff]
      %v349 = vld [vmem:[%s169 + $0x560] sm:$0xff]
      %v350 = vld [vmem:[%s169 + $0x568] sm:$0xff]
      %v351 = vld [vmem:[%s169 + $0x570] sm:$0xff]
      %v352 = vld [vmem:[%s169 + $0x578] sm:$0xff]
      %v353 = vld [vmem:[%s1] sm:$0xff]
      %v354 = vld [vmem:[%s1 + $0x8] sm:$0xff]
      %v355 = vld [vmem:[%s1 + $0x10] sm:$0xff]
      %v356 = vld [vmem:[%s1 + $0x18] sm:$0xff]
      %v357 = vld [vmem:[%s1 + $0x20] sm:$0xff]
      %v358 = vld [vmem:[%s1 + $0x28] sm:$0xff]
      %v359 = vld [vmem:[%s1 + $0x30] sm:$0xff]
      %v360 = vld [vmem:[%s1 + $0x38] sm:$0xff]
      %v361 = vld [vmem:[%s1 + $0x40] sm:$0xff]
      %v362 = vld [vmem:[%s1 + $0x48] sm:$0xff]
      %v363 = vld [vmem:[%s1 + $0x50] sm:$0xff]
      %v364 = vld [vmem:[%s1 + $0x58] sm:$0xff]
      %v365 = vld [vmem:[%s1 + $0x60] sm:$0xff]
      %v366 = vld [vmem:[%s1 + $0x68] sm:$0xff]
      %v367 = vld [vmem:[%s1 + $0x70] sm:$0xff]
      %v368 = vld [vmem:[%s1 + $0x78] sm:$0xff]
      %v369 = vld [vmem:[%s1 + $0x80] sm:$0xff]
      %v370 = vld [vmem:[%s1 + $0x88] sm:$0xff]
      %v371 = vld [vmem:[%s1 + $0x90] sm:$0xff]
      %v372 = vld [vmem:[%s1 + $0x98] sm:$0xff]
      %v373 = vld [vmem:[%s1 + $0xa0] sm:$0xff]
      %v374 = vld [vmem:[%s1 + $0xa8] sm:$0xff]
      %v375 = vld [vmem:[%s1 + $0xb0] sm:$0xff]
      %v376 = vld [vmem:[%s1 + $0xb8] sm:$0xff]
      %v377 = vld [vmem:[%s1 + $0xc0] sm:$0xff]
      %v378 = vld [vmem:[%s1 + $0xc8] sm:$0xff]
      %v379 = vld [vmem:[%s1 + $0xd0] sm:$0xff]
      %v380 = vld [vmem:[%s1 + $0xd8] sm:$0xff]
      %v381 = vld [vmem:[%s1 + $0xe0] sm:$0xff]
      %v382 = vld [vmem:[%s1 + $0xe8] sm:$0xff]
      %v383 = vld [vmem:[%s1 + $0xf0] sm:$0xff]
      %v384 = vld [vmem:[%s1 + $0xf8] sm:$0xff]
      %v385 = vld [vmem:[%s1 + $0x100] sm:$0xff]
      %v386 = vld [vmem:[%s1 + $0x108] sm:$0xff]
      %v387 = vld [vmem:[%s1 + $0x110] sm:$0xff]
      %v388 = vld [vmem:[%s1 + $0x118] sm:$0xff]
      %v389 = vld [vmem:[%s1 + $0x120] sm:$0xff]
      %v390 = vld [vmem:[%s1 + $0x128] sm:$0xff]
      %v391 = vld [vmem:[%s1 + $0x130] sm:$0xff]
      %v392 = vld [vmem:[%s1 + $0x138] sm:$0xff]
      %v393 = vld [vmem:[%s1 + $0x140] sm:$0xff]
      %v394 = vld [vmem:[%s1 + $0x148] sm:$0xff]
      %v395 = vld [vmem:[%s1 + $0x150] sm:$0xff]
      %v396 = vld [vmem:[%s1 + $0x158] sm:$0xff]
      %v397 = vld [vmem:[%s1 + $0x160] sm:$0xff]
      %v398 = vld [vmem:[%s1 + $0x168] sm:$0xff]
      %v399 = vld [vmem:[%s1 + $0x170] sm:$0xff]
      %v400 = vld [vmem:[%s1 + $0x178] sm:$0xff]
      %v401 = vld [vmem:[%s1 + $0x180] sm:$0xff]
      %v402 = vld [vmem:[%s1 + $0x188] sm:$0xff]
      %v403 = vld [vmem:[%s1 + $0x190] sm:$0xff]
      %v404 = vld [vmem:[%s1 + $0x198] sm:$0xff]
      %v405 = vld [vmem:[%s1 + $0x1a0] sm:$0xff]
      %v406 = vld [vmem:[%s1 + $0x1a8] sm:$0xff]
      %v407 = vld [vmem:[%s1 + $0x1b0] sm:$0xff]
      %v408 = vld [vmem:[%s1 + $0x1b8] sm:$0xff]
      %v409 = vld [vmem:[%s1 + $0x1c0] sm:$0xff]
      %v410 = vld [vmem:[%s1 + $0x1c8] sm:$0xff]
      %v411 = vld [vmem:[%s1 + $0x1d0] sm:$0xff]
      %v412 = vld [vmem:[%s1 + $0x1d8] sm:$0xff]
      %v413 = vld [vmem:[%s1 + $0x1e0] sm:$0xff]
      %v414 = vld [vmem:[%s1 + $0x1e8] sm:$0xff]
      %v415 = vld [vmem:[%s1 + $0x1f0] sm:$0xff]
      %v416 = vld [vmem:[%s1 + $0x1f8] sm:$0xff]
      %v417 = vld [vmem:[%s1 + $0x200] sm:$0xff]
      %v418 = vld [vmem:[%s1 + $0x208] sm:$0xff]
      %v419 = vld [vmem:[%s1 + $0x210] sm:$0xff]
      %v420 = vld [vmem:[%s1 + $0x218] sm:$0xff]
      %v421 = vld [vmem:[%s1 + $0x220] sm:$0xff]
      %v422 = vld [vmem:[%s1 + $0x228] sm:$0xff]
      %v423 = vld [vmem:[%s1 + $0x230] sm:$0xff]
      %v424 = vld [vmem:[%s1 + $0x238] sm:$0xff]
      %v425 = vld [vmem:[%s1 + $0x240] sm:$0xff]
      %v426 = vld [vmem:[%s1 + $0x248] sm:$0xff]
      %v427 = vld [vmem:[%s1 + $0x250] sm:$0xff]
      %v428 = vld [vmem:[%s1 + $0x258] sm:$0xff]
      %v429 = vld [vmem:[%s1 + $0x260] sm:$0xff]
      %v430 = vld [vmem:[%s1 + $0x268] sm:$0xff]
      %v431 = vld [vmem:[%s1 + $0x270] sm:$0xff]
      %v432 = vld [vmem:[%s1 + $0x278] sm:$0xff]
      %v433 = vld [vmem:[%s1 + $0x280] sm:$0xff]
      %v434 = vld [vmem:[%s1 + $0x288] sm:$0xff]
      %v435 = vld [vmem:[%s1 + $0x290] sm:$0xff]
      %v436 = vld [vmem:[%s1 + $0x298] sm:$0xff]
      %v437 = vld [vmem:[%s1 + $0x2a0] sm:$0xff]
      %v438 = vld [vmem:[%s1 + $0x2a8] sm:$0xff]
      %v439 = vld [vmem:[%s1 + $0x2b0] sm:$0xff]
      %v440 = vld [vmem:[%s1 + $0x2b8] sm:$0xff]
      %v441 = vld [vmem:[%s1 + $0x2c0] sm:$0xff]
      %v442 = vld [vmem:[%s1 + $0x2c8] sm:$0xff]
      %v443 = vld [vmem:[%s1 + $0x2d0] sm:$0xff]
      %v444 = vld [vmem:[%s1 + $0x2d8] sm:$0xff]
      %v445 = vld [vmem:[%s1 + $0x2e0] sm:$0xff]
      %v446 = vld [vmem:[%s1 + $0x2e8] sm:$0xff]
      %v447 = vld [vmem:[%s1 + $0x2f0] sm:$0xff]
      %v448 = vld [vmem:[%s1 + $0x2f8] sm:$0xff]
      %v449 = vld [vmem:[%s1 + $0x300] sm:$0xff]
      %v450 = vld [vmem:[%s1 + $0x308] sm:$0xff]
      %v451 = vld [vmem:[%s1 + $0x310] sm:$0xff]
      %v452 = vld [vmem:[%s1 + $0x318] sm:$0xff]
      %v453 = vld [vmem:[%s1 + $0x320] sm:$0xff]
      %v454 = vld [vmem:[%s1 + $0x328] sm:$0xff]
      %v455 = vld [vmem:[%s1 + $0x330] sm:$0xff]
      %v456 = vld [vmem:[%s1 + $0x338] sm:$0xff]
      %v457 = vld [vmem:[%s1 + $0x340] sm:$0xff]
      %v458 = vld [vmem:[%s1 + $0x348] sm:$0xff]
      %v459 = vld [vmem:[%s1 + $0x350] sm:$0xff]
      %v460 = vld [vmem:[%s1 + $0x358] sm:$0xff]
      %v461 = vld [vmem:[%s1 + $0x360] sm:$0xff]
      %v462 = vld [vmem:[%s1 + $0x368] sm:$0xff]
      %v463 = vld [vmem:[%s1 + $0x370] sm:$0xff]
      %v464 = vld [vmem:[%s1 + $0x378] sm:$0xff]
      %v465 = vld [vmem:[%s1 + $0x380] sm:$0xff]
      %v466 = vld [vmem:[%s1 + $0x388] sm:$0xff]
      %v467 = vld [vmem:[%s1 + $0x390] sm:$0xff]
      %v468 = vld [vmem:[%s1 + $0x398] sm:$0xff]
      %v469 = vld [vmem:[%s1 + $0x3a0] sm:$0xff]
      %v470 = vld [vmem:[%s1 + $0x3a8] sm:$0xff]
      %v471 = vld [vmem:[%s1 + $0x3b0] sm:$0xff]
      %v472 = vld [vmem:[%s1 + $0x3b8] sm:$0xff]
      %v473 = vld [vmem:[%s1 + $0x3c0] sm:$0xff]
      %v474 = vld [vmem:[%s1 + $0x3c8] sm:$0xff]
      %v475 = vld [vmem:[%s1 + $0x3d0] sm:$0xff]
      %v476 = vld [vmem:[%s1 + $0x3d8] sm:$0xff]
      %v477 = vld [vmem:[%s1 + $0x3e0] sm:$0xff]
      %v478 = vld [vmem:[%s1 + $0x3e8] sm:$0xff]
      %v479 = vld [vmem:[%s1 + $0x3f0] sm:$0xff]
      %v480 = vld [vmem:[%s1 + $0x3f8] sm:$0xff]
      %v481 = vld [vmem:[%s2] sm:$0x1]
      %v483 = vlaneseq
      %v484 = vshrl.u32 %v483, 7
      %v485 = vsub.s32 0, %v484
      %v486 = vrot.slane %v481, %v485
      %488 = vmatprep.subr.mxu0 0.0
      %489 = vmatpush1.msra.mxu0 %v353
      %490 = vmatprep.subr.mxu0 0.0
      %491 = vmatpush1.msra.mxu0 %v354
      %492 = vmatprep.subr.mxu0 0.0
      %493 = vmatpush1.msra.mxu0 %v355
      %494 = vmatprep.subr.mxu0 0.0
      %495 = vmatpush1.msra.mxu0 %v356
      %496 = vmatprep.subr.mxu0 0.0
      %497 = vmatpush1.msra.mxu0 %v357
      %498 = vmatprep.subr.mxu0 0.0
      %499 = vmatpush1.msra.mxu0 %v358
      %500 = vmatprep.subr.mxu0 0.0
      %501 = vmatpush1.msra.mxu0 %v359
      %502 = vmatprep.subr.mxu0 0.0
      %503 = vmatpush1.msra.mxu0 %v360
      %504 = vmatprep.subr.mxu0 0.0
      %505 = vmatpush1.msra.mxu0 %v361
      %506 = vmatprep.subr.mxu0 0.0
      %507 = vmatpush1.msra.mxu0 %v362
      %508 = vmatprep.subr.mxu0 0.0
      %509 = vmatpush1.msra.mxu0 %v363
      %510 = vmatprep.subr.mxu0 0.0
      %511 = vmatpush1.msra.mxu0 %v364
      %512 = vmatprep.subr.mxu0 0.0
      %513 = vmatpush1.msra.mxu0 %v365
      %514 = vmatprep.subr.mxu0 0.0
      %515 = vmatpush1.msra.mxu0 %v366
      %516 = vmatprep.subr.mxu0 0.0
      %517 = vmatpush1.msra.mxu0 %v367
      %518 = vmatprep.subr.mxu0 0.0
      %519 = vmatpush1.msra.mxu0 %v368
      %520 = vmatprep.subr.mxu0 0.0
      %521 = vmatpush1.msra.mxu0 %v369
      %522 = vmatprep.subr.mxu0 0.0
      %523 = vmatpush1.msra.mxu0 %v370
      %524 = vmatprep.subr.mxu0 0.0
      %525 = vmatpush1.msra.mxu0 %v371
      %526 = vmatprep.subr.mxu0 0.0
      %527 = vmatpush1.msra.mxu0 %v372
      %528 = vmatprep.subr.mxu0 0.0
      %529 = vmatpush1.msra.mxu0 %v373
      %530 = vmatprep.subr.mxu0 0.0
      %531 = vmatpush1.msra.mxu0 %v374
      %532 = vmatprep.subr.mxu0 0.0
      %533 = vmatpush1.msra.mxu0 %v375
      %534 = vmatprep.subr.mxu0 0.0
      %535 = vmatpush1.msra.mxu0 %v376
      %536 = vmatprep.subr.mxu0 0.0
      %537 = vmatpush1.msra.mxu0 %v377
      %538 = vmatprep.subr.mxu0 0.0
      %539 = vmatpush1.msra.mxu0 %v378
      %540 = vmatprep.subr.mxu0 0.0
      %541 = vmatpush1.msra.mxu0 %v379
      %542 = vmatprep.subr.mxu0 0.0
      %543 = vmatpush1.msra.mxu0 %v380
      %544 = vmatprep.subr.mxu0 0.0
      %545 = vmatpush1.msra.mxu0 %v381
      %546 = vmatprep.subr.mxu0 0.0
      %547 = vmatpush1.msra.mxu0 %v382
      %548 = vmatprep.subr.mxu0 0.0
      %549 = vmatpush1.msra.mxu0 %v383
      %550 = vmatprep.subr.mxu0 0.0
      %551 = vmatpush1.msra.mxu0 %v384
      %552 = vmatprep.mubr.f32.mxu0 %v178
      %553 = vmatmul.mubr.f32.gmra.mrb[0].mxu0 %v177
      %v554 = vpop.f32.mrb[0].mxu0
      %v555 = vadd.f32 %v486, %v554
      %v556 = vpop.f32.mrb[0].mxu0
      %557 = vmatprep.mubr.f32.mxu0 %v186
      %558 = vmatmul.mubr.f32.gmra.mrb[0].mxu0 %v185
      %v559 = vpop.f32.mrb[0].mxu0
      %v560 = vadd.f32 %v486, %v559
      %v561 = vpop.f32.mrb[0].mxu0
      %562 = vmatprep.mubr.f32.mxu0 %v194
      %563 = vmatmul.mubr.f32.gmra.mrb[0].mxu0 %v193
      %v564 = vpop.f32.mrb[0].mxu0
      %v565 = vadd.f32 %v486, %v564
      %v566 = vpop.f32.mrb[0].mxu0
      %567 = vmatprep.mubr.f32.mxu0 %v202
      %568 = vmatmul.mubr.f32.gmra.mrb[0].mxu0 %v201
      %v569 = vpop.f32.mrb[0].mxu0
      %v570 = vadd.f32 %v486, %v569
      %v571 = vpop.f32.mrb[0].mxu0
      %572 = vmatprep.mubr.f32.mxu0 %v210
      %573 = vmatmul.mubr.f32.gmra.mrb[0].mxu0 %v209
      %v574 = vpop.f32.mrb[0].mxu0
      %v575 = vadd.f32 %v486, %v574
      %v576 = vpop.f32.mrb[0].mxu0
      %577 = vmatprep.mubr.f32.mxu0 %v218
      %578 = vmatmul.mubr.f32.gmra.mrb[0].mxu0 %v217
      %v579 = vpop.f32.mrb[0].mxu0
      %v580 = vadd.f32 %v486, %v579
      %v581 = vpop.f32.mrb[0].mxu0
      %582 = vmatprep.mubr.f32.mxu0 %v226
      %583 = vmatmul.mubr.f32.gmra.mrb[0].mxu0 %v225
      %v584 = vpop.f32.mrb[0].mxu0
      %v585 = vadd.f32 %v486, %v584
      %v586 = vpop.f32.mrb[0].mxu0
      %587 = vmatprep.mubr.f32.mxu0 %v234
      %588 = vmatmul.mubr.f32.gmra.mrb[0].mxu0 %v233
      %v589 = vpop.f32.mrb[0].mxu0
      %v590 = vadd.f32 %v486, %v589
      %v591 = vpop.f32.mrb[0].mxu0
      %592 = vmatprep.mubr.f32.mxu0 %v242
      %593 = vmatmul.mubr.f32.gmra.mrb[0].mxu0 %v241
      %v594 = vpop.f32.mrb[0].mxu0
      %v595 = vadd.f32 %v486, %v594
      %v596 = vpop.f32.mrb[0].mxu0
      %597 = vmatprep.mubr.f32.mxu0 %v250
      %598 = vmatmul.mubr.f32.gmra.mrb[0].mxu0 %v249
      %v599 = vpop.f32.mrb[0].mxu0
      %v600 = vadd.f32 %v486, %v599
      %v601 = vpop.f32.mrb[0].mxu0
      %602 = vmatprep.mubr.f32.mxu0 %v258
      %603 = vmatmul.mubr.f32.gmra.mrb[0].mxu0 %v257
      %v604 = vpop.f32.mrb[0].mxu0
      %v605 = vadd.f32 %v486, %v604
      %v606 = vpop.f32.mrb[0].mxu0
      %607 = vmatprep.mubr.f32.mxu0 %v266
      %608 = vmatmul.mubr.f32.gmra.mrb[0].mxu0 %v265
      %v609 = vpop.f32.mrb[0].mxu0
      %v610 = vadd.f32 %v486, %v609
      %v611 = vpop.f32.mrb[0].mxu0
      %612 = vmatprep.mubr.f32.mxu0 %v274
      %613 = vmatmul.mubr.f32.gmra.mrb[0].mxu0 %v273
      %v614 = vpop.f32.mrb[0].mxu0
      %v615 = vadd.f32 %v486, %v614
      %v616 = vpop.f32.mrb[0].mxu0
      %617 = vmatprep.mubr.f32.mxu0 %v282
      %618 = vmatmul.mubr.f32.gmra.mrb[0].mxu0 %v281
      %v619 = vpop.f32.mrb[0].mxu0
      %v620 = vadd.f32 %v486, %v619
      %v621 = vpop.f32.mrb[0].mxu0
      %622 = vmatprep.mubr.f32.mxu0 %v290
      %623 = vmatmul.mubr.f32.gmra.mrb[0].mxu0 %v289
      %v624 = vpop.f32.mrb[0].mxu0
      %v625 = vadd.f32 %v486, %v624
      %v626 = vpop.f32.mrb[0].mxu0
      %627 = vmatprep.mubr.f32.mxu0 %v298
      %628 = vmatmul.mubr.f32.gmra.mrb[0].mxu0 %v297
      %v629 = vpop.f32.mrb[0].mxu0
      %v630 = vadd.f32 %v486, %v629
      %v631 = vpop.f32.mrb[0].mxu0
      %632 = vmatprep.mubr.f32.mxu0 %v306
      %633 = vmatmul.mubr.f32.gmra.mrb[0].mxu0 %v305
      %v634 = vpop.f32.mrb[0].mxu0
      %v635 = vadd.f32 %v486, %v634
      %v636 = vpop.f32.mrb[0].mxu0
      %637 = vmatprep.mubr.f32.mxu0 %v314
      %638 = vmatmul.mubr.f32.gmra.mrb[0].mxu0 %v313
      %v639 = vpop.f32.mrb[0].mxu0
      %v640 = vadd.f32 %v486, %v639
      %v641 = vpop.f32.mrb[0].mxu0
      %642 = vmatprep.mubr.f32.mxu0 %v322
      %643 = vmatmul.mubr.f32.gmra.mrb[0].mxu0 %v321
      %v644 = vpop.f32.mrb[0].mxu0
      %v645 = vadd.f32 %v486, %v644
      %v646 = vpop.f32.mrb[0].mxu0
      %647 = vmatprep.mubr.f32.mxu0 %v330
      %648 = vmatmul.mubr.f32.gmra.mrb[0].mxu0 %v329
      %v649 = vpop.f32.mrb[0].mxu0
      %v650 = vadd.f32 %v486, %v649
      %v651 = vpop.f32.mrb[0].mxu0
      %652 = vmatprep.mubr.f32.mxu0 %v338
      %653 = vmatmul.mubr.f32.gmra.mrb[0].mxu0 %v337
      %v654 = vpop.f32.mrb[0].mxu0
      %v655 = vadd.f32 %v486, %v654
      %v656 = vpop.f32.mrb[0].mxu0
      %657 = vmatprep.mubr.f32.mxu0 %v346
      %658 = vmatmul.mubr.f32.gmra.mrb[0].mxu0 %v345
      %v659 = vpop.f32.mrb[0].mxu0
      %v660 = vadd.f32 %v486, %v659
      %v661 = vpop.f32.mrb[0].mxu0
      %662 = vdwg.mxu0
      %663 = vmatprep.subr.mxu0 0.0
      %664 = vmatpush1.msra.mxu0 %v385
      %665 = vmatprep.subr.mxu0 0.0
      %666 = vmatpush1.msra.mxu0 %v386
      %667 = vmatprep.subr.mxu0 0.0
      %668 = vmatpush1.msra.mxu0 %v387
      %669 = vmatprep.subr.mxu0 0.0
      %670 = vmatpush1.msra.mxu0 %v388
      %671 = vmatprep.subr.mxu0 0.0
      %672 = vmatpush1.msra.mxu0 %v389
      %673 = vmatprep.subr.mxu0 0.0
      %674 = vmatpush1.msra.mxu0 %v390
      %675 = vmatprep.subr.mxu0 0.0
      %676 = vmatpush1.msra.mxu0 %v391
      %677 = vmatprep.subr.mxu0 0.0
      %678 = vmatpush1.msra.mxu0 %v392
      %679 = vmatprep.subr.mxu0 0.0
      %680 = vmatpush1.msra.mxu0 %v393
      %681 = vmatprep.subr.mxu0 0.0
      %682 = vmatpush1.msra.mxu0 %v394
      %683 = vmatprep.subr.mxu0 0.0
      %684 = vmatpush1.msra.mxu0 %v395
      %685 = vmatprep.subr.mxu0 0.0
      %686 = vmatpush1.msra.mxu0 %v396
      %687 = vmatprep.subr.mxu0 0.0
      %688 = vmatpush1.msra.mxu0 %v397
      %689 = vmatprep.subr.mxu0 0.0
      %690 = vmatpush1.msra.mxu0 %v398
      %691 = vmatprep.subr.mxu0 0.0
      %692 = vmatpush1.msra.mxu0 %v399
      %693 = vmatprep.subr.mxu0 0.0
      %694 = vmatpush1.msra.mxu0 %v400
      %695 = vmatprep.subr.mxu0 0.0
      %696 = vmatpush1.msra.mxu0 %v401
      %697 = vmatprep.subr.mxu0 0.0
      %698 = vmatpush1.msra.mxu0 %v402
      %699 = vmatprep.subr.mxu0 0.0
      %700 = vmatpush1.msra.mxu0 %v403
      %701 = vmatprep.subr.mxu0 0.0
      %702 = vmatpush1.msra.mxu0 %v404
      %703 = vmatprep.subr.mxu0 0.0
      %704 = vmatpush1.msra.mxu0 %v405
      %705 = vmatprep.subr.mxu0 0.0
      %706 = vmatpush1.msra.mxu0 %v406
      %707 = vmatprep.subr.mxu0 0.0
      %708 = vmatpush1.msra.mxu0 %v407
      %709 = vmatprep.subr.mxu0 0.0
      %710 = vmatpush1.msra.mxu0 %v408
      %711 = vmatprep.subr.mxu0 0.0
      %712 = vmatpush1.msra.mxu0 %v409
      %713 = vmatprep.subr.mxu0 0.0
      %714 = vmatpush1.msra.mxu0 %v410
      %715 = vmatprep.subr.mxu0 0.0
      %716 = vmatpush1.msra.mxu0 %v411
      %717 = vmatprep.subr.mxu0 0.0
      %718 = vmatpush1.msra.mxu0 %v412
      %719 = vmatprep.subr.mxu0 0.0
      %720 = vmatpush1.msra.mxu0 %v413
      %721 = vmatprep.subr.mxu0 0.0
      %722 = vmatpush1.msra.mxu0 %v414
      %723 = vmatprep.subr.mxu0 0.0
      %724 = vmatpush1.msra.mxu0 %v415
      %725 = vmatprep.subr.mxu0 0.0
      %726 = vmatpush1.msra.mxu0 %v416
      %727 = vmatprep.mubr.f32.mxu0 %v180
      %728 = vmatmul.mubr.f32.gmra.mrb[0].mxu0 %v179
      %v729 = vpop.f32.mrb[0].mxu0
      %v730 = vadd.f32 %v555, %v729
      %v731 = vpop.f32.mrb[0].mxu0
      %732 = vmatprep.mubr.f32.mxu0 %v188
      %733 = vmatmul.mubr.f32.gmra.mrb[0].mxu0 %v187
      %v734 = vpop.f32.mrb[0].mxu0
      %v735 = vadd.f32 %v560, %v734
      %v736 = vpop.f32.mrb[0].mxu0
      %737 = vmatprep.mubr.f32.mxu0 %v196
      %738 = vmatmul.mubr.f32.gmra.mrb[0].mxu0 %v195
      %v739 = vpop.f32.mrb[0].mxu0
      %v740 = vadd.f32 %v565, %v739
      %v741 = vpop.f32.mrb[0].mxu0
      %742 = vmatprep.mubr.f32.mxu0 %v204
      %743 = vmatmul.mubr.f32.gmra.mrb[0].mxu0 %v203
      %v744 = vpop.f32.mrb[0].mxu0
      %v745 = vadd.f32 %v570, %v744
      %v746 = vpop.f32.mrb[0].mxu0
      %747 = vmatprep.mubr.f32.mxu0 %v212
      %748 = vmatmul.mubr.f32.gmra.mrb[0].mxu0 %v211
      %v749 = vpop.f32.mrb[0].mxu0
      %v750 = vadd.f32 %v575, %v749
      %v751 = vpop.f32.mrb[0].mxu0
      %752 = vmatprep.mubr.f32.mxu0 %v220
      %753 = vmatmul.mubr.f32.gmra.mrb[0].mxu0 %v219
      %v754 = vpop.f32.mrb[0].mxu0
      %v755 = vadd.f32 %v580, %v754
      %v756 = vpop.f32.mrb[0].mxu0
      %757 = vmatprep.mubr.f32.mxu0 %v228
      %758 = vmatmul.mubr.f32.gmra.mrb[0].mxu0 %v227
      %v759 = vpop.f32.mrb[0].mxu0
      %v760 = vadd.f32 %v585, %v759
      %v761 = vpop.f32.mrb[0].mxu0
      %762 = vmatprep.mubr.f32.mxu0 %v236
      %763 = vmatmul.mubr.f32.gmra.mrb[0].mxu0 %v235
      %v764 = vpop.f32.mrb[0].mxu0
      %v765 = vadd.f32 %v590, %v764
      %v766 = vpop.f32.mrb[0].mxu0
      %767 = vmatprep.mubr.f32.mxu0 %v244
      %768 = vmatmul.mubr.f32.gmra.mrb[0].mxu0 %v243
      %v769 = vpop.f32.mrb[0].mxu0
      %v770 = vadd.f32 %v595, %v769
      %v771 = vpop.f32.mrb[0].mxu0
      %772 = vmatprep.mubr.f32.mxu0 %v252
      %773 = vmatmul.mubr.f32.gmra.mrb[0].mxu0 %v251
      %v774 = vpop.f32.mrb[0].mxu0
      %v775 = vadd.f32 %v600, %v774
      %v776 = vpop.f32.mrb[0].mxu0
      %777 = vmatprep.mubr.f32.mxu0 %v260
      %778 = vmatmul.mubr.f32.gmra.mrb[0].mxu0 %v259
      %v779 = vpop.f32.mrb[0].mxu0
      %v780 = vadd.f32 %v605, %v779
      %v781 = vpop.f32.mrb[0].mxu0
      %782 = vmatprep.mubr.f32.mxu0 %v268
      %783 = vmatmul.mubr.f32.gmra.mrb[0].mxu0 %v267
      %v784 = vpop.f32.mrb[0].mxu0
      %v785 = vadd.f32 %v610, %v784
      %v786 = vpop.f32.mrb[0].mxu0
      %787 = vmatprep.mubr.f32.mxu0 %v276
      %788 = vmatmul.mubr.f32.gmra.mrb[0].mxu0 %v275
      %v789 = vpop.f32.mrb[0].mxu0
      %v790 = vadd.f32 %v615, %v789
      %v791 = vpop.f32.mrb[0].mxu0
      %792 = vmatprep.mubr.f32.mxu0 %v284
      %793 = vmatmul.mubr.f32.gmra.mrb[0].mxu0 %v283
      %v794 = vpop.f32.mrb[0].mxu0
      %v795 = vadd.f32 %v620, %v794
      %v796 = vpop.f32.mrb[0].mxu0
      %797 = vmatprep.mubr.f32.mxu0 %v292
      %798 = vmatmul.mubr.f32.gmra.mrb[0].mxu0 %v291
      %v799 = vpop.f32.mrb[0].mxu0
      %v800 = vadd.f32 %v625, %v799
      %v801 = vpop.f32.mrb[0].mxu0
      %802 = vmatprep.mubr.f32.mxu0 %v300
      %803 = vmatmul.mubr.f32.gmra.mrb[0].mxu0 %v299
      %v804 = vpop.f32.mrb[0].mxu0
      %v805 = vadd.f32 %v630, %v804
      %v806 = vpop.f32.mrb[0].mxu0
      %807 = vmatprep.mubr.f32.mxu0 %v308
      %808 = vmatmul.mubr.f32.gmra.mrb[0].mxu0 %v307
      %v809 = vpop.f32.mrb[0].mxu0
      %v810 = vadd.f32 %v635, %v809
      %v811 = vpop.f32.mrb[0].mxu0
      %812 = vmatprep.mubr.f32.mxu0 %v316
      %813 = vmatmul.mubr.f32.gmra.mrb[0].mxu0 %v315
      %v814 = vpop.f32.mrb[0].mxu0
      %v815 = vadd.f32 %v640, %v814
      %v816 = vpop.f32.mrb[0].mxu0
      %817 = vmatprep.mubr.f32.mxu0 %v324
      %818 = vmatmul.mubr.f32.gmra.mrb[0].mxu0 %v323
      %v819 = vpop.f32.mrb[0].mxu0
      %v820 = vadd.f32 %v645, %v819
      %v821 = vpop.f32.mrb[0].mxu0
      %822 = vmatprep.mubr.f32.mxu0 %v332
      %823 = vmatmul.mubr.f32.gmra.mrb[0].mxu0 %v331
      %v824 = vpop.f32.mrb[0].mxu0
      %v825 = vadd.f32 %v650, %v824
      %v826 = vpop.f32.mrb[0].mxu0
      %827 = vmatprep.mubr.f32.mxu0 %v340
      %828 = vmatmul.mubr.f32.gmra.mrb[0].mxu0 %v339
      %v829 = vpop.f32.mrb[0].mxu0
      %v830 = vadd.f32 %v655, %v829
      %v831 = vpop.f32.mrb[0].mxu0
      %832 = vmatprep.mubr.f32.mxu0 %v348
      %833 = vmatmul.mubr.f32.gmra.mrb[0].mxu0 %v347
      %v834 = vpop.f32.mrb[0].mxu0
      %v835 = vadd.f32 %v660, %v834
      %v836 = vpop.f32.mrb[0].mxu0
      %837 = vdwg.mxu0
      %838 = vmatprep.subr.mxu0 0.0
      %839 = vmatpush1.msra.mxu0 %v417
      %840 = vmatprep.subr.mxu0 0.0
      %841 = vmatpush1.msra.mxu0 %v418
      %842 = vmatprep.subr.mxu0 0.0
      %843 = vmatpush1.msra.mxu0 %v419
      %844 = vmatprep.subr.mxu0 0.0
      %845 = vmatpush1.msra.mxu0 %v420
      %846 = vmatprep.subr.mxu0 0.0
      %847 = vmatpush1.msra.mxu0 %v421
      %848 = vmatprep.subr.mxu0 0.0
      %849 = vmatpush1.msra.mxu0 %v422
      %850 = vmatprep.subr.mxu0 0.0
      %851 = vmatpush1.msra.mxu0 %v423
      %852 = vmatprep.subr.mxu0 0.0
      %853 = vmatpush1.msra.mxu0 %v424
      %854 = vmatprep.subr.mxu0 0.0
      %855 = vmatpush1.msra.mxu0 %v425
      %856 = vmatprep.subr.mxu0 0.0
      %857 = vmatpush1.msra.mxu0 %v426
      %858 = vmatprep.subr.mxu0 0.0
      %859 = vmatpush1.msra.mxu0 %v427
      %860 = vmatprep.subr.mxu0 0.0
      %861 = vmatpush1.msra.mxu0 %v428
      %862 = vmatprep.subr.mxu0 0.0
      %863 = vmatpush1.msra.mxu0 %v429
      %864 = vmatprep.subr.mxu0 0.0
      %865 = vmatpush1.msra.mxu0 %v430
      %866 = vmatprep.subr.mxu0 0.0
      %867 = vmatpush1.msra.mxu0 %v431
      %868 = vmatprep.subr.mxu0 0.0
      %869 = vmatpush1.msra.mxu0 %v432
      %870 = vmatprep.subr.mxu0 0.0
      %871 = vmatpush1.msra.mxu0 %v433
      %872 = vmatprep.subr.mxu0 0.0
      %873 = vmatpush1.msra.mxu0 %v434
      %874 = vmatprep.subr.mxu0 0.0
      %875 = vmatpush1.msra.mxu0 %v435
      %876 = vmatprep.subr.mxu0 0.0
      %877 = vmatpush1.msra.mxu0 %v436
      %878 = vmatprep.subr.mxu0 0.0
      %879 = vmatpush1.msra.mxu0 %v437
      %880 = vmatprep.subr.mxu0 0.0
      %881 = vmatpush1.msra.mxu0 %v438
      %882 = vmatprep.subr.mxu0 0.0
      %883 = vmatpush1.msra.mxu0 %v439
      %884 = vmatprep.subr.mxu0 0.0
      %885 = vmatpush1.msra.mxu0 %v440
      %886 = vmatprep.subr.mxu0 0.0
      %887 = vmatpush1.msra.mxu0 %v441
      %888 = vmatprep.subr.mxu0 0.0
      %889 = vmatpush1.msra.mxu0 %v442
      %890 = vmatprep.subr.mxu0 0.0
      %891 = vmatpush1.msra.mxu0 %v443
      %892 = vmatprep.subr.mxu0 0.0
      %893 = vmatpush1.msra.mxu0 %v444
      %894 = vmatprep.subr.mxu0 0.0
      %895 = vmatpush1.msra.mxu0 %v445
      %896 = vmatprep.subr.mxu0 0.0
      %897 = vmatpush1.msra.mxu0 %v446
      %898 = vmatprep.subr.mxu0 0.0
      %899 = vmatpush1.msra.mxu0 %v447
      %900 = vmatprep.subr.mxu0 0.0
      %901 = vmatpush1.msra.mxu0 %v448
      %902 = vmatprep.mubr.f32.mxu0 %v182
      %903 = vmatmul.mubr.f32.gmra.mrb[0].mxu0 %v181
      %v904 = vpop.f32.mrb[0].mxu0
      %v905 = vadd.f32 %v730, %v904
      %v906 = vpop.f32.mrb[0].mxu0
      %907 = vmatprep.mubr.f32.mxu0 %v190
      %908 = vmatmul.mubr.f32.gmra.mrb[0].mxu0 %v189
      %v909 = vpop.f32.mrb[0].mxu0
      %v910 = vadd.f32 %v735, %v909
      %v911 = vpop.f32.mrb[0].mxu0
      %912 = vmatprep.mubr.f32.mxu0 %v198
      %913 = vmatmul.mubr.f32.gmra.mrb[0].mxu0 %v197
      %v914 = vpop.f32.mrb[0].mxu0
      %v915 = vadd.f32 %v740, %v914
      %v916 = vpop.f32.mrb[0].mxu0
      %917 = vmatprep.mubr.f32.mxu0 %v206
      %918 = vmatmul.mubr.f32.gmra.mrb[0].mxu0 %v205
      %v919 = vpop.f32.mrb[0].mxu0
      %v920 = vadd.f32 %v745, %v919
      %v921 = vpop.f32.mrb[0].mxu0
      %922 = vmatprep.mubr.f32.mxu0 %v214
      %923 = vmatmul.mubr.f32.gmra.mrb[0].mxu0 %v213
      %v924 = vpop.f32.mrb[0].mxu0
      %v925 = vadd.f32 %v750, %v924
      %v926 = vpop.f32.mrb[0].mxu0
      %927 = vmatprep.mubr.f32.mxu0 %v222
      %928 = vmatmul.mubr.f32.gmra.mrb[0].mxu0 %v221
      %v929 = vpop.f32.mrb[0].mxu0
      %v930 = vadd.f32 %v755, %v929
      %v931 = vpop.f32.mrb[0].mxu0
      %932 = vmatprep.mubr.f32.mxu0 %v230
      %933 = vmatmul.mubr.f32.gmra.mrb[0].mxu0 %v229
      %v934 = vpop.f32.mrb[0].mxu0
      %v935 = vadd.f32 %v760, %v934
      %v936 = vpop.f32.mrb[0].mxu0
      %937 = vmatprep.mubr.f32.mxu0 %v238
      %938 = vmatmul.mubr.f32.gmra.mrb[0].mxu0 %v237
      %v939 = vpop.f32.mrb[0].mxu0
      %v940 = vadd.f32 %v765, %v939
      %v941 = vpop.f32.mrb[0].mxu0
      %942 = vmatprep.mubr.f32.mxu0 %v246
      %943 = vmatmul.mubr.f32.gmra.mrb[0].mxu0 %v245
      %v944 = vpop.f32.mrb[0].mxu0
      %v945 = vadd.f32 %v770, %v944
      %v946 = vpop.f32.mrb[0].mxu0
      %947 = vmatprep.mubr.f32.mxu0 %v254
      %948 = vmatmul.mubr.f32.gmra.mrb[0].mxu0 %v253
      %v949 = vpop.f32.mrb[0].mxu0
      %v950 = vadd.f32 %v775, %v949
      %v951 = vpop.f32.mrb[0].mxu0
      %952 = vmatprep.mubr.f32.mxu0 %v262
      %953 = vmatmul.mubr.f32.gmra.mrb[0].mxu0 %v261
      %v954 = vpop.f32.mrb[0].mxu0
      %v955 = vadd.f32 %v780, %v954
      %v956 = vpop.f32.mrb[0].mxu0
      %957 = vmatprep.mubr.f32.mxu0 %v270
      %958 = vmatmul.mubr.f32.gmra.mrb[0].mxu0 %v269
      %v959 = vpop.f32.mrb[0].mxu0
      %v960 = vadd.f32 %v785, %v959
      %v961 = vpop.f32.mrb[0].mxu0
      %962 = vmatprep.mubr.f32.mxu0 %v278
      %963 = vmatmul.mubr.f32.gmra.mrb[0].mxu0 %v277
      %v964 = vpop.f32.mrb[0].mxu0
      %v965 = vadd.f32 %v790, %v964
      %v966 = vpop.f32.mrb[0].mxu0
      %967 = vmatprep.mubr.f32.mxu0 %v286
      %968 = vmatmul.mubr.f32.gmra.mrb[0].mxu0 %v285
      %v969 = vpop.f32.mrb[0].mxu0
      %v970 = vadd.f32 %v795, %v969
      %v971 = vpop.f32.mrb[0].mxu0
      %972 = vmatprep.mubr.f32.mxu0 %v294
      %973 = vmatmul.mubr.f32.gmra.mrb[0].mxu0 %v293
      %v974 = vpop.f32.mrb[0].mxu0
      %v975 = vadd.f32 %v800, %v974
      %v976 = vpop.f32.mrb[0].mxu0
      %977 = vmatprep.mubr.f32.mxu0 %v302
      %978 = vmatmul.mubr.f32.gmra.mrb[0].mxu0 %v301
      %v979 = vpop.f32.mrb[0].mxu0
      %v980 = vadd.f32 %v805, %v979
      %v981 = vpop.f32.mrb[0].mxu0
      %982 = vmatprep.mubr.f32.mxu0 %v310
      %983 = vmatmul.mubr.f32.gmra.mrb[0].mxu0 %v309
      %v984 = vpop.f32.mrb[0].mxu0
      %v985 = vadd.f32 %v810, %v984
      %v986 = vpop.f32.mrb[0].mxu0
      %987 = vmatprep.mubr.f32.mxu0 %v318
      %988 = vmatmul.mubr.f32.gmra.mrb[0].mxu0 %v317
      %v989 = vpop.f32.mrb[0].mxu0
      %v990 = vadd.f32 %v815, %v989
      %v991 = vpop.f32.mrb[0].mxu0
      %992 = vmatprep.mubr.f32.mxu0 %v326
      %993 = vmatmul.mubr.f32.gmra.mrb[0].mxu0 %v325
      %v994 = vpop.f32.mrb[0].mxu0
      %v995 = vadd.f32 %v820, %v994
      %v996 = vpop.f32.mrb[0].mxu0
      %997 = vmatprep.mubr.f32.mxu0 %v334
      %998 = vmatmul.mubr.f32.gmra.mrb[0].mxu0 %v333
      %v999 = vpop.f32.mrb[0].mxu0
      %v1000 = vadd.f32 %v825, %v999
      %v1001 = vpop.f32.mrb[0].mxu0
      %1002 = vmatprep.mubr.f32.mxu0 %v342
      %1003 = vmatmul.mubr.f32.gmra.mrb[0].mxu0 %v341
      %v1004 = vpop.f32.mrb[0].mxu0
      %v1005 = vadd.f32 %v830, %v1004
      %v1006 = vpop.f32.mrb[0].mxu0
      %1007 = vmatprep.mubr.f32.mxu0 %v350
      %1008 = vmatmul.mubr.f32.gmra.mrb[0].mxu0 %v349
      %v1009 = vpop.f32.mrb[0].mxu0
      %v1010 = vadd.f32 %v835, %v1009
      %v1011 = vpop.f32.mrb[0].mxu0
      %1012 = vdwg.mxu0
      %1013 = vmatprep.subr.mxu0 0.0
      %1014 = vmatpush1.msra.mxu0 %v449
      %1015 = vmatprep.subr.mxu0 0.0
      %1016 = vmatpush1.msra.mxu0 %v450
      %1017 = vmatprep.subr.mxu0 0.0
      %1018 = vmatpush1.msra.mxu0 %v451
      %1019 = vmatprep.subr.mxu0 0.0
      %1020 = vmatpush1.msra.mxu0 %v452
      %1021 = vmatprep.subr.mxu0 0.0
      %1022 = vmatpush1.msra.mxu0 %v453
      %1023 = vmatprep.subr.mxu0 0.0
      %1024 = vmatpush1.msra.mxu0 %v454
      %1025 = vmatprep.subr.mxu0 0.0
      %1026 = vmatpush1.msra.mxu0 %v455
      %1027 = vmatprep.subr.mxu0 0.0
      %1028 = vmatpush1.msra.mxu0 %v456
      %1029 = vmatprep.subr.mxu0 0.0
      %1030 = vmatpush1.msra.mxu0 %v457
      %1031 = vmatprep.subr.mxu0 0.0
      %1032 = vmatpush1.msra.mxu0 %v458
      %1033 = vmatprep.subr.mxu0 0.0
      %1034 = vmatpush1.msra.mxu0 %v459
      %1035 = vmatprep.subr.mxu0 0.0
      %1036 = vmatpush1.msra.mxu0 %v460
      %1037 = vmatprep.subr.mxu0 0.0
      %1038 = vmatpush1.msra.mxu0 %v461
      %1039 = vmatprep.subr.mxu0 0.0
      %1040 = vmatpush1.msra.mxu0 %v462
      %1041 = vmatprep.subr.mxu0 0.0
      %1042 = vmatpush1.msra.mxu0 %v463
      %1043 = vmatprep.subr.mxu0 0.0
      %1044 = vmatpush1.msra.mxu0 %v464
      %1045 = vmatprep.subr.mxu0 0.0
      %1046 = vmatpush1.msra.mxu0 %v465
      %1047 = vmatprep.subr.mxu0 0.0
      %1048 = vmatpush1.msra.mxu0 %v466
      %1049 = vmatprep.subr.mxu0 0.0
      %1050 = vmatpush1.msra.mxu0 %v467
      %1051 = vmatprep.subr.mxu0 0.0
      %1052 = vmatpush1.msra.mxu0 %v468
      %1053 = vmatprep.subr.mxu0 0.0
      %1054 = vmatpush1.msra.mxu0 %v469
      %1055 = vmatprep.subr.mxu0 0.0
      %1056 = vmatpush1.msra.mxu0 %v470
      %1057 = vmatprep.subr.mxu0 0.0
      %1058 = vmatpush1.msra.mxu0 %v471
      %1059 = vmatprep.subr.mxu0 0.0
      %1060 = vmatpush1.msra.mxu0 %v472
      %1061 = vmatprep.subr.mxu0 0.0
      %1062 = vmatpush1.msra.mxu0 %v473
      %1063 = vmatprep.subr.mxu0 0.0
      %1064 = vmatpush1.msra.mxu0 %v474
      %1065 = vmatprep.subr.mxu0 0.0
      %1066 = vmatpush1.msra.mxu0 %v475
      %1067 = vmatprep.subr.mxu0 0.0
      %1068 = vmatpush1.msra.mxu0 %v476
      %1069 = vmatprep.subr.mxu0 0.0
      %1070 = vmatpush1.msra.mxu0 %v477
      %1071 = vmatprep.subr.mxu0 0.0
      %1072 = vmatpush1.msra.mxu0 %v478
      %1073 = vmatprep.subr.mxu0 0.0
      %1074 = vmatpush1.msra.mxu0 %v479
      %1075 = vmatprep.subr.mxu0 0.0
      %1076 = vmatpush1.msra.mxu0 %v480
      %1077 = vmatprep.mubr.f32.mxu0 %v184
      %1078 = vmatmul.mubr.f32.gmra.mrb[0].mxu0 %v183
      %v1079 = vpop.f32.mrb[0].mxu0
      %v1080 = vadd.f32 %v905, %v1079
      %v1081 = vpop.f32.mrb[0].mxu0
      %1082 = vmatprep.mubr.f32.mxu0 %v192
      %1083 = vmatmul.mubr.f32.gmra.mrb[0].mxu0 %v191
      %v1084 = vpop.f32.mrb[0].mxu0
      %v1085 = vadd.f32 %v910, %v1084
      %v1086 = vpop.f32.mrb[0].mxu0
      %1087 = vmatprep.mubr.f32.mxu0 %v200
      %1088 = vmatmul.mubr.f32.gmra.mrb[0].mxu0 %v199
      %v1089 = vpop.f32.mrb[0].mxu0
      %v1090 = vadd.f32 %v915, %v1089
      %v1091 = vpop.f32.mrb[0].mxu0
      %1092 = vmatprep.mubr.f32.mxu0 %v208
      %1093 = vmatmul.mubr.f32.gmra.mrb[0].mxu0 %v207
      %v1094 = vpop.f32.mrb[0].mxu0
      %v1095 = vadd.f32 %v920, %v1094
      %v1096 = vpop.f32.mrb[0].mxu0
      %1097 = vmatprep.mubr.f32.mxu0 %v216
      %1098 = vmatmul.mubr.f32.gmra.mrb[0].mxu0 %v215
      %v1099 = vpop.f32.mrb[0].mxu0
      %v1100 = vadd.f32 %v925, %v1099
      %v1101 = vpop.f32.mrb[0].mxu0
      %1102 = vmatprep.mubr.f32.mxu0 %v224
      %1103 = vmatmul.mubr.f32.gmra.mrb[0].mxu0 %v223
      %v1104 = vpop.f32.mrb[0].mxu0
      %v1105 = vadd.f32 %v930, %v1104
      %v1106 = vpop.f32.mrb[0].mxu0
      %1107 = vmatprep.mubr.f32.mxu0 %v232
      %1108 = vmatmul.mubr.f32.gmra.mrb[0].mxu0 %v231
      %v1109 = vpop.f32.mrb[0].mxu0
      %v1110 = vadd.f32 %v935, %v1109
      %v1111 = vpop.f32.mrb[0].mxu0
      %1112 = vmatprep.mubr.f32.mxu0 %v240
      %1113 = vmatmul.mubr.f32.gmra.mrb[0].mxu0 %v239
      %v1114 = vpop.f32.mrb[0].mxu0
      %v1115 = vadd.f32 %v940, %v1114
      %v1116 = vpop.f32.mrb[0].mxu0
      %1117 = vmatprep.mubr.f32.mxu0 %v248
      %1118 = vmatmul.mubr.f32.gmra.mrb[0].mxu0 %v247
      %v1119 = vpop.f32.mrb[0].mxu0
      %v1120 = vadd.f32 %v945, %v1119
      %v1121 = vpop.f32.mrb[0].mxu0
      %1122 = vmatprep.mubr.f32.mxu0 %v256
      %1123 = vmatmul.mubr.f32.gmra.mrb[0].mxu0 %v255
      %v1124 = vpop.f32.mrb[0].mxu0
      %v1125 = vadd.f32 %v950, %v1124
      %v1126 = vpop.f32.mrb[0].mxu0
      %1127 = vmatprep.mubr.f32.mxu0 %v264
      %1128 = vmatmul.mubr.f32.gmra.mrb[0].mxu0 %v263
      %v1129 = vpop.f32.mrb[0].mxu0
      %v1130 = vadd.f32 %v955, %v1129
      %v1131 = vpop.f32.mrb[0].mxu0
      %1132 = vmatprep.mubr.f32.mxu0 %v272
      %1133 = vmatmul.mubr.f32.gmra.mrb[0].mxu0 %v271
      %v1134 = vpop.f32.mrb[0].mxu0
      %v1135 = vadd.f32 %v960, %v1134
      %v1136 = vpop.f32.mrb[0].mxu0
      %1137 = vmatprep.mubr.f32.mxu0 %v280
      %1138 = vmatmul.mubr.f32.gmra.mrb[0].mxu0 %v279
      %v1139 = vpop.f32.mrb[0].mxu0
      %v1140 = vadd.f32 %v965, %v1139
      %v1141 = vpop.f32.mrb[0].mxu0
      %1142 = vmatprep.mubr.f32.mxu0 %v288
      %1143 = vmatmul.mubr.f32.gmra.mrb[0].mxu0 %v287
      %v1144 = vpop.f32.mrb[0].mxu0
      %v1145 = vadd.f32 %v970, %v1144
      %v1146 = vpop.f32.mrb[0].mxu0
      %1147 = vmatprep.mubr.f32.mxu0 %v296
      %1148 = vmatmul.mubr.f32.gmra.mrb[0].mxu0 %v295
      %v1149 = vpop.f32.mrb[0].mxu0
      %v1150 = vadd.f32 %v975, %v1149
      %v1151 = vpop.f32.mrb[0].mxu0
      %1152 = vmatprep.mubr.f32.mxu0 %v304
      %1153 = vmatmul.mubr.f32.gmra.mrb[0].mxu0 %v303
      %v1154 = vpop.f32.mrb[0].mxu0
      %v1155 = vadd.f32 %v980, %v1154
      %v1156 = vpop.f32.mrb[0].mxu0
      %1157 = vmatprep.mubr.f32.mxu0 %v312
      %1158 = vmatmul.mubr.f32.gmra.mrb[0].mxu0 %v311
      %v1159 = vpop.f32.mrb[0].mxu0
      %v1160 = vadd.f32 %v985, %v1159
      %v1161 = vpop.f32.mrb[0].mxu0
      %1162 = vmatprep.mubr.f32.mxu0 %v320
      %1163 = vmatmul.mubr.f32.gmra.mrb[0].mxu0 %v319
      %v1164 = vpop.f32.mrb[0].mxu0
      %v1165 = vadd.f32 %v990, %v1164
      %v1166 = vpop.f32.mrb[0].mxu0
      %1167 = vmatprep.mubr.f32.mxu0 %v328
      %1168 = vmatmul.mubr.f32.gmra.mrb[0].mxu0 %v327
      %v1169 = vpop.f32.mrb[0].mxu0
      %v1170 = vadd.f32 %v995, %v1169
      %v1171 = vpop.f32.mrb[0].mxu0
      %1172 = vmatprep.mubr.f32.mxu0 %v336
      %1173 = vmatmul.mubr.f32.gmra.mrb[0].mxu0 %v335
      %v1174 = vpop.f32.mrb[0].mxu0
      %v1175 = vadd.f32 %v1000, %v1174
      %v1176 = vpop.f32.mrb[0].mxu0
      %1177 = vmatprep.mubr.f32.mxu0 %v344
      %1178 = vmatmul.mubr.f32.gmra.mrb[0].mxu0 %v343
      %v1179 = vpop.f32.mrb[0].mxu0
      %v1180 = vadd.f32 %v1005, %v1179
      %v1181 = vpop.f32.mrb[0].mxu0
      %1182 = vmatprep.mubr.f32.mxu0 %v352
      %1183 = vmatmul.mubr.f32.gmra.mrb[0].mxu0 %v351
      %v1184 = vpop.f32.mrb[0].mxu0
      %v1185 = vadd.f32 %v1010, %v1184
      %v1186 = vpop.f32.mrb[0].mxu0
      %1187 = vdwg.mxu0
      %v1188 = vmax.f32 %v1080, 0.0
      %v1189 = vmax.f32 %v1085, 0.0
      %v1190 = vmax.f32 %v1090, 0.0
      %v1191 = vmax.f32 %v1095, 0.0
      %v1192 = vmax.f32 %v1100, 0.0
      %v1193 = vmax.f32 %v1105, 0.0
      %v1194 = vmax.f32 %v1110, 0.0
      %v1195 = vmax.f32 %v1115, 0.0
      %v1196 = vmax.f32 %v1120, 0.0
      %v1197 = vmax.f32 %v1125, 0.0
      %v1198 = vmax.f32 %v1130, 0.0
      %v1199 = vmax.f32 %v1135, 0.0
      %v1200 = vmax.f32 %v1140, 0.0
      %v1201 = vmax.f32 %v1145, 0.0
      %v1202 = vmax.f32 %v1150, 0.0
      %v1203 = vmax.f32 %v1155, 0.0
      %v1204 = vmax.f32 %v1160, 0.0
      %v1205 = vmax.f32 %v1165, 0.0
      %v1206 = vmax.f32 %v1170, 0.0
      %v1207 = vmax.f32 %v1175, 0.0
      %v1208 = vmax.f32 %v1180, 0.0
      %v1209 = vmax.f32 %v1185, 0.0
      %1210 = vst [vmem:[%s175] sm:$0xff] %v1188
      %1211 = vst [vmem:[%s175 + $0x8] sm:$0xff] %v1189
      %1212 = vst [vmem:[%s175 + $0x10] sm:$0xff] %v1190
      %1213 = vst [vmem:[%s175 + $0x18] sm:$0xff] %v1191
      %1214 = vst [vmem:[%s175 + $0x20] sm:$0xff] %v1192
      %1215 = vst [vmem:[%s175 + $0x28] sm:$0xff] %v1193
      %1216 = vst [vmem:[%s175 + $0x30] sm:$0xff] %v1194
      %1217 = vst [vmem:[%s175 + $0x38] sm:$0xff] %v1195
      %1218 = vst [vmem:[%s175 + $0x40] sm:$0xff] %v1196
      %1219 = vst [vmem:[%s175 + $0x48] sm:$0xff] %v1197
      %1220 = vst [vmem:[%s175 + $0x50] sm:$0xff] %v1198
      %1221 = vst [vmem:[%s175 + $0x58] sm:$0xff] %v1199
      %1222 = vst [vmem:[%s175 + $0x60] sm:$0xff] %v1200
      %1223 = vst [vmem:[%s175 + $0x68] sm:$0xff] %v1201
      %1224 = vst [vmem:[%s175 + $0x70] sm:$0xff] %v1202
      %1225 = vst [vmem:[%s175 + $0x78] sm:$0xff] %v1203
      %1226 = vst [vmem:[%s175 + $0x80] sm:$0xff] %v1204
      %1227 = vst [vmem:[%s175 + $0x88] sm:$0xff] %v1205
      %1228 = vst [vmem:[%s175 + $0x90] sm:$0xff] %v1206
      %1229 = vst [vmem:[%s175 + $0x98] sm:$0xff] %v1207
      %1230 = vst [vmem:[%s175 + $0xa0] sm:$0xff] %v1208
      %1231 = vst [vmem:[%s175 + $0xa8] sm:$0xff] %v1209
      %s1232 = smul.u32 22, %s14
      %p1233 = scmp.lt.s32.totalorder %s1232, 43
      %s1234 = scalar_select %p1233, %s1232, 43
      %s1235 = smul.addr %s1234, 8
      %s1236 = scalar_lea.vmem %s3, %s1235
      // Predicated region
      $region33: #{_lambda_.1} parent=31 // pred_check
        %p1237 = pneg %p100
      $region34: #{_lambda_.1} parent=31 // pred_check_branch
        %1239 = sbr.rel (%p1237) target = $region36
      $region35: #{_lambda_.1} parent=31 // pred_region
        %s1240 = smul.u32 22, %s14
      $region36: #{_lambda_.1} parent=31 // pred_fallthru
        _
    $region32: #{_lambda_.1} parent=5 // pred_fallthru
      _
    %p1241 = scmp.le.s32.totalorder 2, %s9
    // Predicated region
    $region37: #{_lambda_.1} parent=5 // pred_check
      %p1242 = pneg %p1241
    $region38: #{_lambda_.1} parent=5 // pred_check_branch
      %1244 = sbr.rel (%p1242) target = $region40
    $region39: #{_lambda_.1} parent=5 // pred_region
      %s1245 = ssub.s32 %s9, 2
      // Predicated region
      $region41: #{_lambda_.1} parent=39 // pred_check
        %p1246 = pneg %p106
      $region42: #{_lambda_.1} parent=39 // pred_check_branch
        %1248 = sbr.rel (%p1246) target = $region44
      $region43: #{_lambda_.1} parent=39 // pred_region
        %s1249 = smul.u32 22, %s15
        %p1250 = scmp.lt.s32.totalorder %s1249, 43
        %s1251 = scalar_select %p1250, %s1249, 43
        %s1252 = smul.addr %s1251, 8
        %s1253 = scalar_lea.vmem %s3, %s1252
      $region44: #{_lambda_.1} parent=39 // pred_fallthru
        _
    $region40: #{_lambda_.1} parent=5 // pred_fallthru
      _
  $region6: #{_lambda_.1} parent=0 // loop_footer
    %s13 = sadd.s32 1, %s9
  $region7: #{_lambda_.1} parent=0 // loop_footer_branch
    %8 = sbr.rel target = $region3
  $region8: #{_lambda_.1} parent=0 // loop_exit
    _

</llo_original>
